<compile_context>
chip_gen: v7x
topology: tpu7x:2x2x1
jax: 0.10.0
libtpu: 0.0.40
codegen_flags: <defaults>
</compile_context>

<pallas_src>
import functools

import jax
import jax.numpy as jnp
from jax.experimental import pallas as pl
from jax.experimental.pallas import tpu as pltpu

HIDDEN_DIM = 64
LANE = 128


def _actor_kernel(x_ref, w1_ref, b1_ref, w2_ref, aff_ref, o_ref):
    """One batch tile (transposed layout: batch on lanes).

    x_ref:   (state_dim, TB)      activations
    w1_ref:  (hidden, state_dim)  fc1.weight (PyTorch layout)
    b1_ref:  (hidden, 1)          fc1.bias as a column
    w2_ref:  (action_dim, hidden) fc2.weight (PyTorch layout)
    aff_ref: (action_dim, 3)      columns = [b2, scale, shift]
    o_ref:   (action_dim, TB)
    """
    # fc1 + ReLU: (hidden, sd) @ (sd, TB) -> (hidden, TB); f32 MXU accumulate.
    h = jnp.dot(w1_ref[...], x_ref[...], preferred_element_type=jnp.float32)
    h = jnp.maximum(h + b1_ref[...], 0.0)          # (hidden, 1) lane-broadcast

    # fc2 + tanh + affine rescale to [down, up]: (ad, hidden) @ (hidden, TB).
    y = jnp.dot(w2_ref[...], h, preferred_element_type=jnp.float32)
    aff = aff_ref[...]
    y = jnp.tanh(y + aff[:, 0:1]) * aff[:, 1:2] + aff[:, 2:3]

    o_ref[...] = y.astype(o_ref.dtype)


def _round_up(x, m):
    return ((x + m - 1) // m) * m


def _pick_batch_tile(batch, requested):
    """Lane-axis (batch) tile size."""
    if requested is not None:
        tb = max(int(requested), 1)
    elif batch <= 1024:
        # Single step: at this size the ~0.35us/step grid overhead dominates,
        # so one block is strictly better than splitting.
        tb = batch
    else:
        # Large B: >=4 steps keeps v7x's two TensorCores fed; the 2048-lane cap
        # amortizes per-step overhead while per-step VMEM stays <1 MiB.
        tb = min(2048, _round_up(-(-batch // 4), LANE))
    if tb >= batch:
        return batch            # one full-extent block (block dim == array dim)
    return _round_up(tb, LANE)  # lane-dense tiles; ragged last block is masked


@functools.partial(jax.jit, static_argnames=("batch_tile",))
def actor_forward(x, fc1_w, fc1_b, fc2_w, fc2_b,
                  action_up_bound, action_down_bound, *, batch_tile=None):
    """x: (B, state_dim) f32. Returns (B, action_dim) f32.

    fc1_w: (hidden, state_dim), fc1_b: (hidden,)   -- PyTorch Linear layout
    fc2_w: (action_dim, hidden), fc2_b: (action_dim,)
    action_*_bound: python scalars or (action_dim,) arrays.
    """
    B, state_dim = x.shape
    hidden_dim, sd_w = fc1_w.shape
    action_dim, hd2 = fc2_w.shape
    assert sd_w == state_dim and hd2 == hidden_dim
    assert fc1_b.shape == (hidden_dim,) and fc2_b.shape == (action_dim,)

    # Action-bound affine (supports per-dimension bounds).
    up = jnp.broadcast_to(jnp.asarray(action_up_bound, jnp.float32), (action_dim,))
    down = jnp.broadcast_to(jnp.asarray(action_down_bound, jnp.float32), (action_dim,))
    scale = (up - down) * 0.5
    shift = (up + down) * 0.5

    # Pack b2 / scale / shift into one small operand (fewer DMAs / buffers).
    aff = jnp.stack([fc2_b.astype(jnp.float32), scale, shift], axis=1)   # (ad, 3)

    # Transposed activations: batch on the lane axis.
    x_t = x.astype(jnp.float32).T                                        # (sd, B)
    b1_col = fc1_b.astype(jnp.float32).reshape(hidden_dim, 1)            # (hid, 1)
    w1 = fc1_w.astype(jnp.float32)
    w2 = fc2_w.astype(jnp.float32)

    TB = _pick_batch_tile(B, batch_tile)
    grid = (pl.cdiv(B, TB),)

    out_t = pl.pallas_call(
        _actor_kernel,
        out_shape=jax.ShapeDtypeStruct((action_dim, B), jnp.float32),
        grid=grid,
        in_specs=[
            # x: tiled over batch (lanes), pipelined behind compute.
            pl.BlockSpec((state_dim, TB), lambda i: (0, i)),
            # Weights / bias / affine: same block every step -> VMEM-resident.
            pl.BlockSpec((hidden_dim, state_dim), lambda i: (0, 0)),
            pl.BlockSpec((hidden_dim, 1), lambda i: (0, 0)),
            pl.BlockSpec((action_dim, hidden_dim), lambda i: (0, 0)),
            pl.BlockSpec((action_dim, 3), lambda i: (0, 0)),
        ],
        out_specs=pl.BlockSpec((action_dim, TB), lambda i: (0, i)),
        compiler_params=pltpu.CompilerParams(
            # Batch tiles are independent -> shard steps across TCs (v7x).
            dimension_semantics=("parallel",),
        ),
    )(x_t, w1, b1_col, w2, aff)

    return out_t.T                                                       # (B, ad)


def _reference_forward(x, fc1_w, fc1_b, fc2_w, fc2_b, up, down):
    up = jnp.asarray(up, jnp.float32)
    down = jnp.asarray(down, jnp.float32)
    h = jnp.maximum(x @ fc1_w.T + fc1_b, 0.0)
    return jnp.tanh(h @ fc2_w.T + fc2_b) * (up - down) / 2.0 + (up + down) / 2.0


if __name__ == "__main__":
    # Small shapes consistent with the module's forward.
    batch = 4
    state_dim = 8
    action_dim = 4
    action_up_bound = 2.0
    action_down_bound = -2.0

    key = jax.random.PRNGKey(0)
    k_x, k_w1, k_b1, k_w2, k_b2, k_x2 = jax.random.split(key, 6)

    # Deterministic synthetic parameters in PyTorch Linear layout/init bounds.
    bound1 = 1.0 / (state_dim ** 0.5)
    bound2 = 1.0 / (HIDDEN_DIM ** 0.5)
    fc1_w = jax.random.uniform(k_w1, (HIDDEN_DIM, state_dim), jnp.float32, -bound1, bound1)
    fc1_b = jax.random.uniform(k_b1, (HIDDEN_DIM,), jnp.float32, -bound1, bound1)
    fc2_w = jax.random.uniform(k_w2, (action_dim, HIDDEN_DIM), jnp.float32, -bound2, bound2)
    fc2_b = jax.random.uniform(k_b2, (action_dim,), jnp.float32, -bound2, bound2)

    x = jax.random.normal(k_x, (batch, state_dim), jnp.float32)

    # Scalar action bounds (matches the PyTorch module exactly).
    out = jax.block_until_ready(
        actor_forward(x, fc1_w, fc1_b, fc2_w, fc2_b, action_up_bound, action_down_bound))
    ref = _reference_forward(x, fc1_w, fc1_b, fc2_w, fc2_b, action_up_bound, action_down_bound)
    assert out.shape == (batch, action_dim)
    assert jnp.allclose(out, ref, atol=1e-5, rtol=1e-5), "mismatch (scalar bounds)"

    # Per-dimension action bounds (passed as kernel operands, not baked in).
    up_vec = jnp.array([1.0, 2.0, 0.5, 3.0], jnp.float32)
    down_vec = jnp.array([-1.0, -2.0, -0.5, -3.0], jnp.float32)
    out_v = jax.block_until_ready(
        actor_forward(x, fc1_w, fc1_b, fc2_w, fc2_b, up_vec, down_vec))
    ref_v = _reference_forward(x, fc1_w, fc1_b, fc2_w, fc2_b, up_vec, down_vec)
    assert jnp.allclose(out_v, ref_v, atol=1e-5, rtol=1e-5), "mismatch (vector bounds)"

    # Multi-step grid with a ragged last block (lane-dense tiles + masked store).
    x_big = jax.random.normal(k_x2, (300, state_dim), jnp.float32)
    out_b = jax.block_until_ready(
        actor_forward(x_big, fc1_w, fc1_b, fc2_w, fc2_b,
                      action_up_bound, action_down_bound, batch_tile=128))
    ref_b = _reference_forward(x_big, fc1_w, fc1_b, fc2_w, fc2_b,
                               action_up_bound, action_down_bound)
    assert out_b.shape == (300, action_dim)
    assert jnp.allclose(out_b, ref_b, atol=1e-5, rtol=1e-5), "mismatch (ragged grid)"

    print("KERNEL_OK")
</pallas_src>

<mosaic_0001>
module attributes {stable_mosaic.version = 11 : i64} {
  func.func @_actor_kernel(%arg0: i32, %arg1: memref<8x4xf32, #tpu.memory_space<vmem>>, %arg2: memref<64x8xf32, #tpu.memory_space<vmem>>, %arg3: memref<64x1xf32, #tpu.memory_space<vmem>>, %arg4: memref<4x64xf32, #tpu.memory_space<vmem>>, %arg5: memref<4x3xf32, #tpu.memory_space<vmem>>, %arg6: memref<4x4xf32, #tpu.memory_space<vmem>>) attributes {dimension_semantics = [#tpu.dimension_semantics<parallel>], iteration_bounds = array<i64: 1>, scalar_prefetch = 0 : i64, scratch_operands = 0 : i64, tpu.core_type = #tpu.core_type<tc>, window_params = [{transform_indices = @transform_0, window_bounds = array<i64: 8, 4>}, {pipeline_mode = #tpu.pipeline_mode<synchronous>, transform_indices = @transform_1, window_bounds = array<i64: 64, 8>}, {pipeline_mode = #tpu.pipeline_mode<synchronous>, transform_indices = @transform_2, window_bounds = array<i64: 64, 1>}, {pipeline_mode = #tpu.pipeline_mode<synchronous>, transform_indices = @transform_3, window_bounds = array<i64: 4, 64>}, {pipeline_mode = #tpu.pipeline_mode<synchronous>, transform_indices = @transform_4, window_bounds = array<i64: 4, 3>}, {transform_indices = @transform_5, window_bounds = array<i64: 4, 4>}]} {
    %c0 = arith.constant 0 : index
    %c0_0 = arith.constant 0 : index
    %0 = vector.load %arg2[%c0, %c0_0] : memref<64x8xf32, #tpu.memory_space<vmem>>, vector<64x8xf32>
    %c0_1 = arith.constant 0 : index
    %c0_2 = arith.constant 0 : index
    %1 = vector.load %arg1[%c0_1, %c0_2] : memref<8x4xf32, #tpu.memory_space<vmem>>, vector<8x4xf32>
    %cst = arith.constant dense<0.000000e+00> : vector<64x4xf32>
    %2 = tpu.matmul %0, %1, %cst {dimension_numbers = #tpu.dot_dimension_numbers<[1], [0], [0], [1], [0, 0, 1, 1], [], []>} : vector<64x8xf32>, vector<8x4xf32>, vector<64x4xf32> -> vector<64x4xf32>
    %c0_3 = arith.constant 0 : index
    %c0_4 = arith.constant 0 : index
    %3 = vector.load %arg3[%c0_3, %c0_4] : memref<64x1xf32, #tpu.memory_space<vmem>>, vector<64x1xf32>
    %4 = vector.broadcast %3 : vector<64x1xf32> to vector<64x4xf32>
    %5 = arith.addf %2, %4 : vector<64x4xf32>
    %cst_5 = arith.constant 0.000000e+00 : f32
    %6 = vector.broadcast %cst_5 : f32 to vector<64x4xf32>
    %7 = arith.maximumf %5, %6 : vector<64x4xf32>
    %c0_6 = arith.constant 0 : index
    %c0_7 = arith.constant 0 : index
    %8 = vector.load %arg4[%c0_6, %c0_7] : memref<4x64xf32, #tpu.memory_space<vmem>>, vector<4x64xf32>
    %cst_8 = arith.constant dense<0.000000e+00> : vector<4x4xf32>
    %9 = tpu.matmul %8, %7, %cst_8 {dimension_numbers = #tpu.dot_dimension_numbers<[1], [0], [0], [1], [0, 0, 1, 1], [], []>} : vector<4x64xf32>, vector<64x4xf32>, vector<4x4xf32> -> vector<4x4xf32>
    %c0_9 = arith.constant 0 : index
    %c0_10 = arith.constant 0 : index
    %10 = vector.load %arg5[%c0_9, %c0_10] : memref<4x3xf32, #tpu.memory_space<vmem>>, vector<4x3xf32>
    %11 = vector.extract_strided_slice %10 {offsets = [0, 0], sizes = [4, 1], strides = [1, 1]} : vector<4x3xf32> to vector<4x1xf32>
    %12 = vector.broadcast %11 : vector<4x1xf32> to vector<4x4xf32>
    %13 = arith.addf %9, %12 : vector<4x4xf32>
    %14 = math.tanh %13 : vector<4x4xf32>
    %15 = vector.extract_strided_slice %10 {offsets = [0, 1], sizes = [4, 1], strides = [1, 1]} : vector<4x3xf32> to vector<4x1xf32>
    %16 = vector.broadcast %15 : vector<4x1xf32> to vector<4x4xf32>
    %17 = arith.mulf %14, %16 : vector<4x4xf32>
    %18 = vector.extract_strided_slice %10 {offsets = [0, 2], sizes = [4, 1], strides = [1, 1]} : vector<4x3xf32> to vector<4x1xf32>
    %19 = vector.broadcast %18 : vector<4x1xf32> to vector<4x4xf32>
    %20 = arith.addf %17, %19 : vector<4x4xf32>
    %c0_11 = arith.constant 0 : index
    %c0_12 = arith.constant 0 : index
    %21 = vector.load %arg6[%c0_11, %c0_12] : memref<4x4xf32, #tpu.memory_space<vmem>>, vector<4x4xf32>
    tpu.vector_store %arg6[%c0_11, %c0_12], %20 {strides = array<i32>} : memref<4x4xf32, #tpu.memory_space<vmem>>, vector<4x4xf32>,
    return
  }
  func.func @transform_0(%arg0: i32) -> (i32, i32) {
    %c0_i32 = arith.constant 0 : i32
    %c0_i32_0 = arith.constant 0 : i32
    return %c0_i32, %arg0 : i32, i32
  }
  func.func @transform_1(%arg0: i32) -> (i32, i32) {
    %c0_i32 = arith.constant 0 : i32
    %c0_i32_0 = arith.constant 0 : i32
    %c0_i32_1 = arith.constant 0 : i32
    return %c0_i32, %c0_i32_0 : i32, i32
  }
  func.func @transform_2(%arg0: i32) -> (i32, i32) {
    %c0_i32 = arith.constant 0 : i32
    %c0_i32_0 = arith.constant 0 : i32
    %c0_i32_1 = arith.constant 0 : i32
    return %c0_i32, %c0_i32_0 : i32, i32
  }
  func.func @transform_3(%arg0: i32) -> (i32, i32) {
    %c0_i32 = arith.constant 0 : i32
    %c0_i32_0 = arith.constant 0 : i32
    %c0_i32_1 = arith.constant 0 : i32
    return %c0_i32, %c0_i32_0 : i32, i32
  }
  func.func @transform_4(%arg0: i32) -> (i32, i32) {
    %c0_i32 = arith.constant 0 : i32
    %c0_i32_0 = arith.constant 0 : i32
    %c0_i32_1 = arith.constant 0 : i32
    return %c0_i32, %c0_i32_0 : i32, i32
  }
  func.func @transform_5(%arg0: i32) -> (i32, i32) {
    %c0_i32 = arith.constant 0 : i32
    %c0_i32_0 = arith.constant 0 : i32
    return %c0_i32, %arg0 : i32, i32
  }
}

</mosaic_0001>

<llo_original>
// kernel: actor_forward.1
$region0: #{actor_forward.1}
  #allocation0 [shape = 'u32[]', space=smem, size = 0x4, offset = 0x4, fixed_abs, tag = 'smem constant byte address 0x4 - core index']
  #allocation1 [shape = 'u32[144,128]{1,0:T(1,128)}', space=vmem, size = 0x12000, scoped, tag = 'internal scratch']
  %s0 = inlined_call_operand.vmem [shape: f32[8,4], index: 0, kind: input, shape index: {}]
  %s1 = inlined_call_operand.vmem [shape: f32[64,8], index: 1, kind: input, shape index: {}]
  %s2 = inlined_call_operand.vmem [shape: f32[64,1], index: 2, kind: input, shape index: {}]
  %s3 = inlined_call_operand.vmem [shape: f32[4,64], index: 3, kind: input, shape index: {}]
  %s4 = inlined_call_operand.vmem [shape: f32[4,3], index: 4, kind: input, shape index: {}]
  %s5 = inlined_call_operand.vmem [shape: f32[4,4], index: 5, kind: output, shape index: {}]
  %s6 = sld [smem:[#allocation0]]
  $region30: #{actor_forward.1} parent=0
    _
  %s8 = ssub.s32 1, %s6
  %s9 = scalar_select 0, %s8, %s6
  // Predicated region
  $region2: #{actor_forward.1} parent=0 // pred_check
    _
  $region3: #{actor_forward.1} parent=0 // pred_check_branch
    %11 = sbr.rel (0) target = $region5
  $region4: #{actor_forward.1} parent=0 // pred_region
    _
  $region5: #{actor_forward.1} parent=0 // pred_fallthru
    _
  // Predicated region
  $region6: #{actor_forward.1} parent=0 // pred_check
    _
  $region7: #{actor_forward.1} parent=0 // pred_check_branch
    %13 = sbr.rel (0) target = $region9
  $region8: #{actor_forward.1} parent=0 // pred_region
    _
  $region9: #{actor_forward.1} parent=0 // pred_fallthru
    _
  // Predicated region
  $region10: #{actor_forward.1} parent=0 // pred_check
    _
  $region11: #{actor_forward.1} parent=0 // pred_check_branch
    %15 = sbr.rel (0) target = $region13
  $region12: #{actor_forward.1} parent=0 // pred_region
    _
  $region13: #{actor_forward.1} parent=0 // pred_fallthru
    _
  // Predicated region
  $region14: #{actor_forward.1} parent=0 // pred_check
    _
  $region15: #{actor_forward.1} parent=0 // pred_check_branch
    %17 = sbr.rel (0) target = $region17
  $region16: #{actor_forward.1} parent=0 // pred_region
    _
  $region17: #{actor_forward.1} parent=0 // pred_fallthru
    _
  // Predicated region
  $region18: #{actor_forward.1} parent=0 // pred_check
    _
  $region19: #{actor_forward.1} parent=0 // pred_check_branch
    %19 = sbr.rel (0) target = $region21
  $region20: #{actor_forward.1} parent=0 // pred_region
    _
  $region21: #{actor_forward.1} parent=0 // pred_fallthru
    _
  %v20 = vld [vmem:[%s1] sm:$0xff]
  %v21 = vld [vmem:[%s1 + $0x8] sm:$0xff]
  %v22 = vld [vmem:[%s1 + $0x10] sm:$0xff]
  %v23 = vld [vmem:[%s1 + $0x18] sm:$0xff]
  %v24 = vld [vmem:[%s1 + $0x20] sm:$0xff]
  %v25 = vld [vmem:[%s1 + $0x28] sm:$0xff]
  %v26 = vld [vmem:[%s1 + $0x30] sm:$0xff]
  %v27 = vld [vmem:[%s1 + $0x38] sm:$0xff]
  %v28 = vld [vmem:[%s0] sm:$0xff]
  %v29 = vld [vmem:[%s2] sm:$0xff]
  %v30 = vld [vmem:[%s2 + $0x8] sm:$0xff]
  %v31 = vld [vmem:[%s2 + $0x10] sm:$0xff]
  %v32 = vld [vmem:[%s2 + $0x18] sm:$0xff]
  %v33 = vld [vmem:[%s2 + $0x20] sm:$0xff]
  %v34 = vld [vmem:[%s2 + $0x28] sm:$0xff]
  %v35 = vld [vmem:[%s2 + $0x30] sm:$0xff]
  %v36 = vld [vmem:[%s2 + $0x38] sm:$0xff]
  %38 = vset.pattern.permute.xlu0 0
  %39 = vperm.xlu0 %38, %v29
  %v40 = vpop.permute.xlu0 %39
  %43 = vset.pattern.permute.xlu0 0
  %44 = vperm.xlu0 %43, %v30
  %v45 = vpop.permute.xlu0 %44
  %48 = vset.pattern.permute.xlu0 0
  %49 = vperm.xlu0 %48, %v31
  %v50 = vpop.permute.xlu0 %49
  %53 = vset.pattern.permute.xlu0 0
  %54 = vperm.xlu0 %53, %v32
  %v55 = vpop.permute.xlu0 %54
  %58 = vset.pattern.permute.xlu0 0
  %59 = vperm.xlu0 %58, %v33
  %v60 = vpop.permute.xlu0 %59
  %63 = vset.pattern.permute.xlu0 0
  %64 = vperm.xlu0 %63, %v34
  %v65 = vpop.permute.xlu0 %64
  %68 = vset.pattern.permute.xlu0 0
  %69 = vperm.xlu0 %68, %v35
  %v70 = vpop.permute.xlu0 %69
  %73 = vset.pattern.permute.xlu0 0
  %74 = vperm.xlu0 %73, %v36
  %v75 = vpop.permute.xlu0 %74
  %vm77 = vcmask 64512
  %v79 = vsel %vm77, %v20, 0
  %v82 = vsel %vm77, %v21, 0
  %v85 = vsel %vm77, %v22, 0
  %v88 = vsel %vm77, %v23, 0
  %v91 = vsel %vm77, %v24, 0
  %v94 = vsel %vm77, %v25, 0
  %v97 = vsel %vm77, %v26, 0
  %v100 = vsel %vm77, %v27, 0
  %102 = vmatprep.subr.mxu0 0.0
  %103 = vmatpush1.msra.mxu0 %v28
  %104 = vmatprep.subr.mxu0 0.0
  %105 = vmatpush1.msra.mxu0 0.0
  %106 = vmatprep.subr.mxu0 0.0
  %107 = vmatpush1.msra.mxu0 0.0
  %108 = vmatprep.subr.mxu0 0.0
  %109 = vmatpush1.msra.mxu0 0.0
  %110 = vmatprep.subr.mxu0 0.0
  %111 = vmatpush1.msra.mxu0 0.0
  %112 = vmatprep.subr.mxu0 0.0
  %113 = vmatpush1.msra.mxu0 0.0
  %114 = vmatprep.subr.mxu0 0.0
  %115 = vmatpush1.msra.mxu0 0.0
  %116 = vmatprep.subr.mxu0 0.0
  %117 = vmatpush1.msra.mxu0 0.0
  %118 = vmatprep.subr.mxu0 0.0
  %119 = vmatpush1.msra.mxu0 0.0
  %120 = vmatprep.subr.mxu0 0.0
  %121 = vmatpush1.msra.mxu0 0.0
  %122 = vmatprep.subr.mxu0 0.0
  %123 = vmatpush1.msra.mxu0 0.0
  %124 = vmatprep.subr.mxu0 0.0
  %125 = vmatpush1.msra.mxu0 0.0
  %126 = vmatprep.subr.mxu0 0.0
  %127 = vmatpush1.msra.mxu0 0.0
  %128 = vmatprep.subr.mxu0 0.0
  %129 = vmatpush1.msra.mxu0 0.0
  %130 = vmatprep.subr.mxu0 0.0
  %131 = vmatpush1.msra.mxu0 0.0
  %132 = vmatprep.subr.mxu0 0.0
  %133 = vmatpush1.msra.mxu0 0.0
  %134 = vmatprep.subr.mxu0 0.0
  %135 = vmatpush1.msra.mxu0 0.0
  %136 = vmatprep.subr.mxu0 0.0
  %137 = vmatpush1.msra.mxu0 0.0
  %138 = vmatprep.subr.mxu0 0.0
  %139 = vmatpush1.msra.mxu0 0.0
  %140 = vmatprep.subr.mxu0 0.0
  %141 = vmatpush1.msra.mxu0 0.0
  %142 = vmatprep.subr.mxu0 0.0
  %143 = vmatpush1.msra.mxu0 0.0
  %144 = vmatprep.subr.mxu0 0.0
  %145 = vmatpush1.msra.mxu0 0.0
  %146 = vmatprep.subr.mxu0 0.0
  %147 = vmatpush1.msra.mxu0 0.0
  %148 = vmatprep.subr.mxu0 0.0
  %149 = vmatpush1.msra.mxu0 0.0
  %150 = vmatprep.subr.mxu0 0.0
  %151 = vmatpush1.msra.mxu0 0.0
  %152 = vmatprep.subr.mxu0 0.0
  %153 = vmatpush1.msra.mxu0 0.0
  %154 = vmatprep.subr.mxu0 0.0
  %155 = vmatpush1.msra.mxu0 0.0
  %156 = vmatprep.subr.mxu0 0.0
  %157 = vmatpush1.msra.mxu0 0.0
  %158 = vmatprep.subr.mxu0 0.0
  %159 = vmatpush1.msra.mxu0 0.0
  %160 = vmatprep.subr.mxu0 0.0
  %161 = vmatpush1.msra.mxu0 0.0
  %162 = vmatprep.subr.mxu0 0.0
  %163 = vmatpush1.msra.mxu0 0.0
  %164 = vmatprep.subr.mxu0 0.0
  %165 = vmatpush1.msra.mxu0 0.0
  %166 = vmatprep.mubr.f32.mxu0 0.0
  %167 = vmatmul.mubr.f32.gmra.mrb[0].mxu0 %v79
  %v168 = vpop.f32.mrb[0].mxu0
  %v169 = vadd.f32 %v40, %v168
  %v170 = vpop.f32.mrb[0].mxu0
  %171 = vmatprep.mubr.f32.mxu0 0.0
  %172 = vmatmul.mubr.f32.gmra.mrb[0].mxu0 %v82
  %v173 = vpop.f32.mrb[0].mxu0
  %v174 = vadd.f32 %v45, %v173
  %v175 = vpop.f32.mrb[0].mxu0
  %176 = vmatprep.mubr.f32.mxu0 0.0
  %177 = vmatmul.mubr.f32.gmra.mrb[0].mxu0 %v85
  %v178 = vpop.f32.mrb[0].mxu0
  %v179 = vadd.f32 %v50, %v178
  %v180 = vpop.f32.mrb[0].mxu0
  %181 = vmatprep.mubr.f32.mxu0 0.0
  %182 = vmatmul.mubr.f32.gmra.mrb[0].mxu0 %v88
  %v183 = vpop.f32.mrb[0].mxu0
  %v184 = vadd.f32 %v55, %v183
  %v185 = vpop.f32.mrb[0].mxu0
  %186 = vmatprep.mubr.f32.mxu0 0.0
  %187 = vmatmul.mubr.f32.gmra.mrb[0].mxu0 %v91
  %v188 = vpop.f32.mrb[0].mxu0
  %v189 = vadd.f32 %v60, %v188
  %v190 = vpop.f32.mrb[0].mxu0
  %191 = vmatprep.mubr.f32.mxu0 0.0
  %192 = vmatmul.mubr.f32.gmra.mrb[0].mxu0 %v94
  %v193 = vpop.f32.mrb[0].mxu0
  %v194 = vadd.f32 %v65, %v193
  %v195 = vpop.f32.mrb[0].mxu0
  %196 = vmatprep.mubr.f32.mxu0 0.0
  %197 = vmatmul.mubr.f32.gmra.mrb[0].mxu0 %v97
  %v198 = vpop.f32.mrb[0].mxu0
  %v199 = vadd.f32 %v70, %v198
  %v200 = vpop.f32.mrb[0].mxu0
  %201 = vmatprep.mubr.f32.mxu0 0.0
  %202 = vmatmul.mubr.f32.gmra.mrb[0].mxu0 %v100
  %v203 = vpop.f32.mrb[0].mxu0
  %v204 = vadd.f32 %v75, %v203
  %v205 = vpop.f32.mrb[0].mxu0
  %206 = vdwg.mxu0
  %v207 = vmax.f32 %v169, 0.0
  %v208 = vmax.f32 %v174, 0.0
  %v209 = vmax.f32 %v179, 0.0
  %v210 = vmax.f32 %v184, 0.0
  %v211 = vmax.f32 %v189, 0.0
  %v212 = vmax.f32 %v194, 0.0
  %v213 = vmax.f32 %v199, 0.0
  %v214 = vmax.f32 %v204, 0.0
  %v215 = vld [vmem:[%s3] sm:$0xf]
  %v216 = vld [vmem:[%s4] sm:$0xf]
  %218 = vset.pattern.permute.xlu0 0
  %219 = vperm.xlu0 %218, %v216
  %v220 = vpop.permute.xlu0 %219
  %vm222 = vcmask 523264
  %v224 = vsel %vm222, %v215, 0
  %226 = vmatprep.subr.mxu0 0.0
  %227 = vmatpush1.msra.mxu0 %v207
  %228 = vmatprep.subr.mxu0 0.0
  %229 = vmatpush1.msra.mxu0 %v208
  %230 = vmatprep.subr.mxu0 0.0
  %231 = vmatpush1.msra.mxu0 %v209
  %232 = vmatprep.subr.mxu0 0.0
  %233 = vmatpush1.msra.mxu0 %v210
  %234 = vmatprep.subr.mxu0 0.0
  %235 = vmatpush1.msra.mxu0 %v211
  %236 = vmatprep.subr.mxu0 0.0
  %237 = vmatpush1.msra.mxu0 %v212
  %238 = vmatprep.subr.mxu0 0.0
  %239 = vmatpush1.msra.mxu0 %v213
  %240 = vmatprep.subr.mxu0 0.0
  %241 = vmatpush1.msra.mxu0 %v214
  %242 = vmatprep.subr.mxu0 0.0
  %243 = vmatpush1.msra.mxu0 0.0
  %244 = vmatprep.subr.mxu0 0.0
  %245 = vmatpush1.msra.mxu0 0.0
  %246 = vmatprep.subr.mxu0 0.0
  %247 = vmatpush1.msra.mxu0 0.0
  %248 = vmatprep.subr.mxu0 0.0
  %249 = vmatpush1.msra.mxu0 0.0
  %250 = vmatprep.subr.mxu0 0.0
  %251 = vmatpush1.msra.mxu0 0.0
  %252 = vmatprep.subr.mxu0 0.0
  %253 = vmatpush1.msra.mxu0 0.0
  %254 = vmatprep.subr.mxu0 0.0
  %255 = vmatpush1.msra.mxu0 0.0
  %256 = vmatprep.subr.mxu0 0.0
  %257 = vmatpush1.msra.mxu0 0.0
  %258 = vmatprep.subr.mxu0 0.0
  %259 = vmatpush1.msra.mxu0 0.0
  %260 = vmatprep.subr.mxu0 0.0
  %261 = vmatpush1.msra.mxu0 0.0
  %262 = vmatprep.subr.mxu0 0.0
  %263 = vmatpush1.msra.mxu0 0.0
  %264 = vmatprep.subr.mxu0 0.0
  %265 = vmatpush1.msra.mxu0 0.0
  %266 = vmatprep.subr.mxu0 0.0
  %267 = vmatpush1.msra.mxu0 0.0
  %268 = vmatprep.subr.mxu0 0.0
  %269 = vmatpush1.msra.mxu0 0.0
  %270 = vmatprep.subr.mxu0 0.0
  %271 = vmatpush1.msra.mxu0 0.0
  %272 = vmatprep.subr.mxu0 0.0
  %273 = vmatpush1.msra.mxu0 0.0
  %274 = vmatprep.subr.mxu0 0.0
  %275 = vmatpush1.msra.mxu0 0.0
  %276 = vmatprep.subr.mxu0 0.0
  %277 = vmatpush1.msra.mxu0 0.0
  %278 = vmatprep.subr.mxu0 0.0
  %279 = vmatpush1.msra.mxu0 0.0
  %280 = vmatprep.subr.mxu0 0.0
  %281 = vmatpush1.msra.mxu0 0.0
  %282 = vmatprep.subr.mxu0 0.0
  %283 = vmatpush1.msra.mxu0 0.0
  %284 = vmatprep.subr.mxu0 0.0
  %285 = vmatpush1.msra.mxu0 0.0
  %286 = vmatprep.subr.mxu0 0.0
  %287 = vmatpush1.msra.mxu0 0.0
  %288 = vmatprep.subr.mxu0 0.0
  %289 = vmatpush1.msra.mxu0 0.0
  %290 = vmatprep.mubr.f32.mxu0 0.0
  %291 = vmatmul.mubr.f32.gmra.mrb[0].mxu0 %v224
  %v292 = vpop.f32.mrb[0].mxu0
  %v293 = vadd.f32 %v220, %v292
  %v294 = vpop.f32.mrb[0].mxu0
  %295 = vdwg.mxu0
  %v296 = vtanh.pop %v293
  %297 = vset.pattern.permute.xlu0 1
  %298 = vperm.xlu0 %297, %v216
  %v299 = vpop.permute.xlu0 %298
  %v301 = vmul.f32 %v296, %v299
  %302 = vset.pattern.permute.xlu0 2
  %303 = vperm.xlu0 %302, %v216
  %v304 = vpop.permute.xlu0 %303
  %v306 = vadd.f32 %v301, %v304
  %vm307 = vcmask 27648
  %308 = vst.msk [vmem:[%s5] sm:$0xf] %vm307, %v306
  // Predicated region
  $region22: #{actor_forward.1} parent=0 // pred_check
    _
  $region23: #{actor_forward.1} parent=0 // pred_check_branch
    %310 = sbr.rel (0) target = $region25
  $region24: #{actor_forward.1} parent=0 // pred_region
    _
  $region25: #{actor_forward.1} parent=0 // pred_fallthru
    _
  // Predicated region
  $region26: #{actor_forward.1} parent=0 // pred_check
    _
  $region27: #{actor_forward.1} parent=0 // pred_check_branch
    %312 = sbr.rel (0) target = $region29
  $region28: #{actor_forward.1} parent=0 // pred_region
    _
  $region29: #{actor_forward.1} parent=0 // pred_fallthru
    _

</llo_original>
